<compile_context>
chip_gen: v7x
topology: tpu7x:2x2x1
jax: 0.10.0
libtpu: 0.0.40
codegen_flags: <defaults>
</compile_context>

<pallas_src>
import jax
import jax.numpy as jnp
from jax import lax
from jax.experimental import pallas as pl
from jax.experimental.pallas import tpu as pltpu


def _copy_kv_kernel(kv_ref, out_ref):
    """Success path: stream the cached KV tile through VMEM (with dtype cast)."""
    out_ref[...] = kv_ref[...].astype(out_ref.dtype)


def _zero_fill_kernel(out_ref):
    """Failure path: pure write — no input DMA at all."""
    out_ref[...] = jnp.zeros(out_ref.shape, out_ref.dtype)


def _pick_seq_tile(S, H, itemsize, working_set_bytes):
    """Largest sequence tile whose (1 in + 1 out) x 2 double-buffers fit the budget."""
    bytes_per_row = H * itemsize
    max_rows = max(8, working_set_bytes // (4 * bytes_per_row))
    if S <= max_rows:
        return S                       # full sequence dim is always a legal block
    tS = (max_rows // 8) * 8           # sublane dim must be a multiple of 8
    return max(tS, 8)


def kvcache_layer_proxy_forward(hidden_states, kv_cache, status,
                                *, vmem_working_set_bytes=32 * 1024 * 1024):
    """
    hidden_states : [B, S, H]   only used for output shape/dtype (zero fallback)
    kv_cache      : [B, S, H]   the tensor the 'server' would return
    status        : i32[1]      (1 == 'success', else failure)
    """
    B, S, H = hidden_states.shape
    assert kv_cache.shape == hidden_states.shape
    out_dtype = hidden_states.dtype

    itemsize = max(jnp.dtype(kv_cache.dtype).itemsize, jnp.dtype(out_dtype).itemsize)
    tS = _pick_seq_tile(S, H, itemsize, vmem_working_set_bytes)
    grid = (B, pl.cdiv(S, tS))

    block = (1, tS, H)
    index_map = lambda b, s: (b, s, 0)
    out_spec = pl.BlockSpec(block, index_map)
    out_shape = jax.ShapeDtypeStruct((B, S, H), out_dtype)

    cparams = pltpu.CompilerParams(
        dimension_semantics=("parallel", "parallel"),
        vmem_limit_bytes=48 * 1024 * 1024,   # safe on v5e/v6e (128 MiB) and v7x (64 MiB)
    )

    def _success():
        # Tiled HBM->VMEM->HBM copy of kv_cache only; hidden_states never touched.
        return pl.pallas_call(
            _copy_kv_kernel,
            out_shape=out_shape,
            grid=grid,
            in_specs=[pl.BlockSpec(block, index_map)],
            out_specs=out_spec,
            compiler_params=cparams,
        )(kv_cache)

    def _failure():
        # torch.zeros_like(hidden_states): output-only kernel, zero HBM reads.
        return pl.pallas_call(
            _zero_fill_kernel,
            out_shape=out_shape,
            grid=grid,
            out_specs=out_spec,
            compiler_params=cparams,
        )()

    return lax.cond(status[0] == 1, _success, _failure)


# TODO(synk): the ZMQ socket RPC (send_pyobj/recv_pyobj), streamer, and generate()
# driver loop are host-side I/O / control flow with no Pallas equivalent.

if __name__ == "__main__":
    key = jax.random.PRNGKey(0)
    k1, k2 = jax.random.split(key)

    B, S, H = 2, 8, 128
    hidden_states = jax.random.normal(k1, (B, S, H), dtype=jnp.float32)
    # Deterministic "server-side" KV cache tensor for (worker_id, layer_id).
    kv_cache = jax.random.normal(k2, (B, S, H), dtype=jnp.float32)

    fwd = jax.jit(kvcache_layer_proxy_forward)

    # Success path: returns the cached kv tensor.
    status_ok = jnp.array([1], dtype=jnp.int32)
    out_ok = jax.block_until_ready(fwd(hidden_states, kv_cache, status_ok))
    assert jnp.allclose(out_ok, kv_cache), "success path mismatch"

    # Failure path: returns zeros_like(hidden_states).
    status_fail = jnp.array([0], dtype=jnp.int32)
    out_fail = jax.block_until_ready(fwd(hidden_states, kv_cache, status_fail))
    assert jnp.allclose(out_fail, jnp.zeros_like(hidden_states)), "failure path mismatch"

    print("KERNEL_OK")
</pallas_src>

<mosaic_0001>
module attributes {stable_mosaic.version = 11 : i64} {
  func.func @_copy_kv_kernel(%arg0: i32, %arg1: i32, %arg2: memref<1x8x128xf32, #tpu.memory_space<vmem>>, %arg3: memref<1x8x128xf32, #tpu.memory_space<vmem>>) attributes {dimension_semantics = [#tpu.dimension_semantics<parallel>, #tpu.dimension_semantics<parallel>], iteration_bounds = array<i64: 2, 1>, scalar_prefetch = 0 : i64, scratch_operands = 0 : i64, tpu.core_type = #tpu.core_type<tc>, window_params = [{transform_indices = @transform_0, window_bounds = array<i64: 1, 8, 128>}, {transform_indices = @transform_1, window_bounds = array<i64: 1, 8, 128>}]} {
    %c0 = arith.constant 0 : index
    %c0_0 = arith.constant 0 : index
    %c0_1 = arith.constant 0 : index
    %0 = vector.load %arg2[%c0, %c0_0, %c0_1] : memref<1x8x128xf32, #tpu.memory_space<vmem>>, vector<1x8x128xf32>
    %c0_2 = arith.constant 0 : index
    %c0_3 = arith.constant 0 : index
    %c0_4 = arith.constant 0 : index
    %1 = vector.load %arg3[%c0_2, %c0_3, %c0_4] : memref<1x8x128xf32, #tpu.memory_space<vmem>>, vector<1x8x128xf32>
    tpu.vector_store %arg3[%c0_2, %c0_3, %c0_4], %0 {strides = array<i32>} : memref<1x8x128xf32, #tpu.memory_space<vmem>>, vector<1x8x128xf32>,
    return
  }
  func.func @transform_0(%arg0: i32, %arg1: i32) -> (i32, i32, i32) {
    %c0_i32 = arith.constant 0 : i32
    %c0_i32_0 = arith.constant 0 : i32
    return %arg0, %arg1, %c0_i32 : i32, i32, i32
  }
  func.func @transform_1(%arg0: i32, %arg1: i32) -> (i32, i32, i32) {
    %c0_i32 = arith.constant 0 : i32
    %c0_i32_0 = arith.constant 0 : i32
    return %arg0, %arg1, %c0_i32 : i32, i32, i32
  }
}

module attributes {stable_mosaic.version = 11 : i64} {
  func.func @_zero_fill_kernel(%arg0: i32, %arg1: i32, %arg2: memref<1x8x128xf32, #tpu.memory_space<vmem>>) attributes {dimension_semantics = [#tpu.dimension_semantics<parallel>, #tpu.dimension_semantics<parallel>], iteration_bounds = array<i64: 2, 1>, scalar_prefetch = 0 : i64, scratch_operands = 0 : i64, tpu.core_type = #tpu.core_type<tc>, window_params = [{transform_indices = @transform_0, window_bounds = array<i64: 1, 8, 128>}]} {
    %cst = arith.constant 0.000000e+00 : f32
    %0 = vector.broadcast %cst : f32 to vector<1x8x128xf32>
    %c0 = arith.constant 0 : index
    %c0_0 = arith.constant 0 : index
    %c0_1 = arith.constant 0 : index
    %1 = vector.load %arg2[%c0, %c0_0, %c0_1] : memref<1x8x128xf32, #tpu.memory_space<vmem>>, vector<1x8x128xf32>
    tpu.vector_store %arg2[%c0, %c0_0, %c0_1], %0 {strides = array<i32>} : memref<1x8x128xf32, #tpu.memory_space<vmem>>, vector<1x8x128xf32>,
    return
  }
  func.func @transform_0(%arg0: i32, %arg1: i32) -> (i32, i32, i32) {
    %c0_i32 = arith.constant 0 : i32
    %c0_i32_0 = arith.constant 0 : i32
    return %arg0, %arg1, %c0_i32 : i32, i32, i32
  }
}

</mosaic_0001>

<llo_original>
// kernel: branch_0_fun.1
$region0: #{branch_0_fun.1}
  #allocation0 [shape = 'u32[]', space=smem, size = 0x4, offset = 0x4, fixed_abs, tag = 'smem constant byte address 0x4 - core index']
  #allocation1 [shape = 'u32[144,128]{1,0:T(1,128)}', space=vmem, size = 0x12000, scoped, tag = 'internal scratch']
  %s0 = inlined_call_operand.hbm [shape: f32[2,8,128], index: 0, kind: output, shape index: {}]
  %s1 = sld [smem:[#allocation0]]
  $region25: #{branch_0_fun.1} parent=0
    _
  %s3 = ssub.s32 1, %s1
  %s4 = scalar_select 0, %s3, %s1
  $region1: #{branch_0_fun.1} parent=0
    #allocation2 [shape = 'u8[8192]{0}', space=vmem, size = 0x2000, scoped, tag = 'output window, operand 0']
    #allocation3 [shape = 's32[2]{0}', space=sflag, size = 0x8, scoped, tag = 'scoped memory for branch_0_fun.1']
    %5 = vsyncpa [#allocation3], 0
    %s6 = scalar_lea.sflag [#allocation3], 1
    %7 = vsyncpa %s6, 0
    loop: start=0, step=1, limit=3
    $region2: #{branch_0_fun.1} parent=1 // loop_pre_header
      _
    $region3: #{branch_0_fun.1} parent=1 // loop_header
      %s9 = sphi 0, %s13
      %p10 = scmp.ge.s32.totalorder %s9, 3
      %s15 = sphi 0, %s25
      %s16 = sphi 0, %s21
      %s17 = sphi 0, %s15
      %s18 = sphi 0, %s16
      %s30 = sphi 0, %s32
      %s33 = sphi 0, %s30
      %s43 = sphi 0, %s33
    $region4: #{branch_0_fun.1} parent=1 // loop_header_branch
      %12 = sbr.rel (%p10) target = $region8
    $region5: #{branch_0_fun.1} parent=1 // loop_body
      %s14 = ssub.s32 %s9, 1
      %s19 = sadd.s32 1, %s16
      %p20 = scmp.ge.s32.totalorder %s19, 1
      %s21 = scalar_select %p20, 0, %s19
      %s22 = sadd.s32 1, %s15
      %s23 = scalar_select %p20, %s22, %s15
      %p24 = scmp.ge.s32.totalorder %s23, 2
      %s25 = scalar_select %p24, 0, %s23
      %s26 = ssub.s32 %s15, %s25
      %s27 = ssub.s32 %s16, %s21
      %s28 = sor.u32 %s26, %s27
      %p29 = scmp.eq.s32.totalorder %s28, 0
      %s31 = sadd.s32 %s30, 1
      %s32 = scalar_select %p29, %s30, %s31
      %p34 = pneg %p29
      %p35 = scmp.eq.s32.totalorder %s9, 1
      %p36 = por %p34, %p35
      %p37 = scmp.ne.s32.totalorder %s30, %s33
      %p38 = scmp.eq.s32.totalorder %s9, 0
      %p39 = por %p37, %p38
      %p40 = scmp.ne.s32.totalorder %s30, %s33
      %p41 = scmp.eq.s32.totalorder %s14, 1
      %p42 = por %p40, %p41
      %p44 = scmp.ne.s32.totalorder %s33, %s43
      %p45 = scmp.eq.s32.totalorder %s14, 0
      %p46 = por %p44, %p45
      %p47 = scmp.lt.s32.totalorder %s9, 2
      // Predicated region
      $region9: #{branch_0_fun.1} parent=5 // pred_check
        %p48 = pneg %p47
      $region10: #{branch_0_fun.1} parent=5 // pred_check_branch
        %50 = sbr.rel (%p48) target = $region12
      $region11: #{branch_0_fun.1} parent=5 // pred_region
        %p51 = pneg %p39
        %p52 = pneg %p36
        %s53 = sand.u32 %s30, 1
        %s54 = scalar_lea.sflag [#allocation3], %s53
        %s55 = sand.u32 %s30, 1
        %s56 = smul.addr %s55, 8
        %s57 = scalar_lea.vmem [#allocation2], %s56
        %58 = vst [vmem:[%s57] sm:$0xff] 0.0
        %s59 = sand.u32 %s30, 1
        %s60 = scalar_lea.sflag [#allocation3], %s59
        %s61 = sand.u32 %s30, 1
        %s62 = smul.addr %s61, 8
        %s63 = scalar_lea.vmem [#allocation2], %s62
        // Predicated region
        $region13: #{branch_0_fun.1} parent=11 // pred_check
          %p64 = pneg %p36
        $region14: #{branch_0_fun.1} parent=11 // pred_check_branch
          %66 = sbr.rel (%p64) target = $region16
        $region15: #{branch_0_fun.1} parent=11 // pred_region
          %s68 = ssub.s32 128, 128
          %69 = vsyncadd %s60, %s68
          %s70 = sadd.s32 %s16, %s15
          %s71 = smul.addr %s70, 128
          %s72 = scalar_lea.hbm %s0, %s71
          %s74 = sshll.u32 %s63, 4
          %s75 = int_to_ptr.vmem [resolvable:$true] %s74
          %77 = dma.vmem_to_hbm [thread:$0]  %s75, 128, %s72, %s60
        $region16: #{branch_0_fun.1} parent=11 // pred_fallthru
          _
      $region12: #{branch_0_fun.1} parent=5 // pred_fallthru
        _
      %p78 = scmp.le.s32.totalorder 1, %s9
      // Predicated region
      $region17: #{branch_0_fun.1} parent=5 // pred_check
        %p79 = pneg %p78
      $region18: #{branch_0_fun.1} parent=5 // pred_check_branch
        %81 = sbr.rel (%p79) target = $region20
      $region19: #{branch_0_fun.1} parent=5 // pred_region
        %s82 = ssub.s32 %s9, 1
        // Predicated region
        $region21: #{branch_0_fun.1} parent=19 // pred_check
          %p83 = pneg %p42
        $region22: #{branch_0_fun.1} parent=19 // pred_check_branch
          %85 = sbr.rel (%p83) target = $region24
        $region23: #{branch_0_fun.1} parent=19 // pred_region
          %s86 = sand.u32 %s33, 1
          %s87 = scalar_lea.sflag [#allocation3], %s86
          %s88 = sand.u32 %s33, 1
          %s89 = smul.addr %s88, 8
          %s90 = scalar_lea.vmem [#allocation2], %s89
          %91 = dma.done %s87, 128
        $region24: #{branch_0_fun.1} parent=19 // pred_fallthru
          _
      $region20: #{branch_0_fun.1} parent=5 // pred_fallthru
        _
    $region6: #{branch_0_fun.1} parent=1 // loop_footer
      %s13 = sadd.s32 1, %s9
    $region7: #{branch_0_fun.1} parent=1 // loop_footer_branch
      %8 = sbr.rel target = $region3
    $region8: #{branch_0_fun.1} parent=1 // loop_exit
      _
    %92 = vsyncpa [#allocation3], 1
    %s93 = scalar_lea.sflag [#allocation3], 1
    %94 = vsyncpa %s93, 1

// kernel: branch_1_fun.1
$region0: #{branch_1_fun.1}
  #allocation0 [shape = 'u32[]', space=smem, size = 0x4, offset = 0x4, fixed_abs, tag = 'smem constant byte address 0x4 - core index']
  #allocation1 [shape = 'u32[144,128]{1,0:T(1,128)}', space=vmem, size = 0x12000, scoped, tag = 'internal scratch']
  %s0 = inlined_call_operand.vmem [shape: f32[2,8,128], index: 0, kind: input, shape index: {}]
  %s1 = inlined_call_operand.hbm [shape: f32[2,8,128], index: 1, kind: output, shape index: {}]
  %s2 = sld [smem:[#allocation0]]
  $region37: #{branch_1_fun.1} parent=0
    _
  %s4 = ssub.s32 1, %s2
  %s5 = scalar_select 0, %s4, %s2
  $region1: #{branch_1_fun.1} parent=0
    #allocation2 [shape = 'u8[8192]{0}', space=vmem, size = 0x2000, scoped, tag = 'output window, operand 0']
    #allocation3 [shape = 's32[2]{0}', space=sflag, size = 0x8, scoped, tag = 'scoped memory for branch_1_fun.1']
    %6 = vsyncpa [#allocation3], 0
    %s7 = scalar_lea.sflag [#allocation3], 1
    %8 = vsyncpa %s7, 0
    loop: start=0, step=1, limit=4
    $region2: #{branch_1_fun.1} parent=1 // loop_pre_header
      _
    $region3: #{branch_1_fun.1} parent=1 // loop_header
      %s10 = sphi 0, %s14
      %p11 = scmp.ge.s32.totalorder %s10, 4
      %s17 = sphi 0, %s29
      %s18 = sphi 0, %s25
      %s19 = sphi 0, %s17
      %s20 = sphi 0, %s18
      %s21 = sphi 0, %s19
      %s22 = sphi 0, %s20
      %s34 = sphi 0, %s36
      %s37 = sphi 0, %s34
      %s38 = sphi 0, %s37
      %s54 = sphi 0, %s38
      %s62 = sphi 0, %s64
      %s65 = sphi 0, %s62
      %s66 = sphi 0, %s65
      %s82 = sphi 0, %s66
    $region4: #{branch_1_fun.1} parent=1 // loop_header_branch
      %13 = sbr.rel (%p11) target = $region8
    $region5: #{branch_1_fun.1} parent=1 // loop_body
      %s15 = ssub.s32 %s10, 1
      %s16 = ssub.s32 %s10, 2
      %s23 = sadd.s32 1, %s18
      %p24 = scmp.ge.s32.totalorder %s23, 1
      %s25 = scalar_select %p24, 0, %s23
      %s26 = sadd.s32 1, %s17
      %s27 = scalar_select %p24, %s26, %s17
      %p28 = scmp.ge.s32.totalorder %s27, 2
      %s29 = scalar_select %p28, 0, %s27
      %s30 = ssub.s32 %s17, %s29
      %s31 = ssub.s32 %s18, %s25
      %s32 = sor.u32 %s30, %s31
      %p33 = scmp.eq.s32.totalorder %s32, 0
      %s35 = sadd.s32 %s34, 1
      %s36 = scalar_select %p33, %s34, %s35
      %p39 = pneg %p33
      %p40 = scmp.eq.s32.totalorder %s10, 1
      %p41 = por %p39, %p40
      %p42 = scmp.ne.s32.totalorder %s34, %s37
      %p43 = scmp.eq.s32.totalorder %s10, 0
      %p44 = por %p42, %p43
      %p45 = scmp.ne.s32.totalorder %s34, %s37
      %p46 = scmp.eq.s32.totalorder %s15, 1
      %p47 = por %p45, %p46
      %p48 = scmp.ne.s32.totalorder %s37, %s38
      %p49 = scmp.eq.s32.totalorder %s15, 0
      %p50 = por %p48, %p49
      %p51 = scmp.ne.s32.totalorder %s37, %s38
      %p52 = scmp.eq.s32.totalorder %s16, 1
      %p53 = por %p51, %p52
      %p55 = scmp.ne.s32.totalorder %s38, %s54
      %p56 = scmp.eq.s32.totalorder %s16, 0
      %p57 = por %p55, %p56
      %s58 = ssub.s32 %s17, %s29
      %s59 = ssub.s32 %s18, %s25
      %s60 = sor.u32 %s58, %s59
      %p61 = scmp.eq.s32.totalorder %s60, 0
      %s63 = sadd.s32 %s62, 1
      %s64 = scalar_select %p61, %s62, %s63
      %p67 = pneg %p61
      %p68 = scmp.eq.s32.totalorder %s10, 1
      %p69 = por %p67, %p68
      %p70 = scmp.ne.s32.totalorder %s62, %s65
      %p71 = scmp.eq.s32.totalorder %s10, 0
      %p72 = por %p70, %p71
      %p73 = scmp.ne.s32.totalorder %s62, %s65
      %p74 = scmp.eq.s32.totalorder %s15, 1
      %p75 = por %p73, %p74
      %p76 = scmp.ne.s32.totalorder %s65, %s66
      %p77 = scmp.eq.s32.totalorder %s15, 0
      %p78 = por %p76, %p77
      %p79 = scmp.ne.s32.totalorder %s65, %s66
      %p80 = scmp.eq.s32.totalorder %s16, 1
      %p81 = por %p79, %p80
      %p83 = scmp.ne.s32.totalorder %s66, %s82
      %p84 = scmp.eq.s32.totalorder %s16, 0
      %p85 = por %p83, %p84
      %p86 = scmp.le.s32.totalorder 1, %s10
      %p87 = scmp.lt.s32.totalorder %s10, 3
      %p88 = pnand %p86, %p87
      %p89 = pneg %p88
      // Predicated region
      $region9: #{branch_1_fun.1} parent=5 // pred_check
        _
      $region10: #{branch_1_fun.1} parent=5 // pred_check_branch
        %91 = sbr.rel (%p88) target = $region12
      $region11: #{branch_1_fun.1} parent=5 // pred_region
        %s92 = ssub.s32 %s10, 1
      $region12: #{branch_1_fun.1} parent=5 // pred_fallthru
        _
      %p93 = scmp.lt.s32.totalorder %s10, 2
      // Predicated region
      $region13: #{branch_1_fun.1} parent=5 // pred_check
        %p94 = pneg %p93
      $region14: #{branch_1_fun.1} parent=5 // pred_check_branch
        %96 = sbr.rel (%p94) target = $region16
      $region15: #{branch_1_fun.1} parent=5 // pred_region
        // Predicated region
        $region17: #{branch_1_fun.1} parent=15 // pred_check
          %p97 = pneg %p44
        $region18: #{branch_1_fun.1} parent=15 // pred_check_branch
          %99 = sbr.rel (%p97) target = $region20
        $region19: #{branch_1_fun.1} parent=15 // pred_region
          %p100 = scmp.lt.s32.totalorder %s17, 1
          %s101 = scalar_select %p100, %s17, 1
          %p102 = scmp.lt.s32.totalorder %s18, 0
          %s103 = scalar_select %p102, %s18, 0
          %s104 = sadd.s32 %s103, %s101
          %s105 = smul.addr %s104, 8
          %s106 = scalar_lea.vmem %s0, %s105
        $region20: #{branch_1_fun.1} parent=15 // pred_fallthru
          _
      $region16: #{branch_1_fun.1} parent=5 // pred_fallthru
        _
      %p107 = scmp.le.s32.totalorder 1, %s10
      %p108 = scmp.lt.s32.totalorder %s10, 3
      %p109 = pnand %p107, %p108
      %p110 = pneg %p109
      // Predicated region
      $region21: #{branch_1_fun.1} parent=5 // pred_check
        _
      $region22: #{branch_1_fun.1} parent=5 // pred_check_branch
        %112 = sbr.rel (%p109) target = $region24
      $region23: #{branch_1_fun.1} parent=5 // pred_region
        %s113 = ssub.s32 %s10, 1
        %p114 = scmp.lt.s32.totalorder %s19, 1
        %s115 = scalar_select %p114, %s19, 1
        %p116 = scmp.lt.s32.totalorder %s20, 0
        %s117 = scalar_select %p116, %s20, 0
        %s118 = sadd.s32 %s117, %s115
        %s119 = smul.addr %s118, 8
        %s120 = scalar_lea.vmem %s0, %s119
        %p121 = pneg %p50
        %p122 = pneg %p47
        %p123 = pneg %p78
        %p124 = pneg %p75
        %s125 = sand.u32 %s65, 1
        %s126 = scalar_lea.sflag [#allocation3], %s125
        %s127 = sand.u32 %s65, 1
        %s128 = smul.addr %s127, 8
        %s129 = scalar_lea.vmem [#allocation2], %s128
        %p130 = scmp.lt.s32.totalorder %s19, 1
        %s131 = scalar_select %p130, %s19, 1
        %p132 = scmp.lt.s32.totalorder %s20, 0
        %s133 = scalar_select %p132, %s20, 0
        %s134 = sadd.s32 %s133, %s131
        %s135 = smul.addr %s134, 8
        %s136 = scalar_lea.vmem %s0, %s135
        %v137 = vld [vmem:[%s136] sm:$0xff]
        %138 = vst [vmem:[%s129] sm:$0xff] %v137
        %s139 = sand.u32 %s65, 1
        %s140 = scalar_lea.sflag [#allocation3], %s139
        %s141 = sand.u32 %s65, 1
        %s142 = smul.addr %s141, 8
        %s143 = scalar_lea.vmem [#allocation2], %s142
        // Predicated region
        $region25: #{branch_1_fun.1} parent=23 // pred_check
          %p144 = pneg %p75
        $region26: #{branch_1_fun.1} parent=23 // pred_check_branch
          %146 = sbr.rel (%p144) target = $region28
        $region27: #{branch_1_fun.1} parent=23 // pred_region
          %s148 = ssub.s32 128, 128
          %149 = vsyncadd %s140, %s148
          %s150 = sadd.s32 %s20, %s19
          %s151 = smul.addr %s150, 128
          %s152 = scalar_lea.hbm %s1, %s151
          %s154 = sshll.u32 %s143, 4
          %s155 = int_to_ptr.vmem [resolvable:$true] %s154
          %157 = dma.vmem_to_hbm [thread:$0]  %s155, 128, %s152, %s140
        $region28: #{branch_1_fun.1} parent=23 // pred_fallthru
          _
      $region24: #{branch_1_fun.1} parent=5 // pred_fallthru
        _
      %p158 = scmp.le.s32.totalorder 2, %s10
      // Predicated region
      $region29: #{branch_1_fun.1} parent=5 // pred_check
        %p159 = pneg %p158
      $region30: #{branch_1_fun.1} parent=5 // pred_check_branch
        %161 = sbr.rel (%p159) target = $region32
      $region31: #{branch_1_fun.1} parent=5 // pred_region
        %s162 = ssub.s32 %s10, 2
        // Predicated region
        $region33: #{branch_1_fun.1} parent=31 // pred_check
          %p163 = pneg %p81
        $region34: #{branch_1_fun.1} parent=31 // pred_check_branch
          %165 = sbr.rel (%p163) target = $region36
        $region35: #{branch_1_fun.1} parent=31 // pred_region
          %s166 = sand.u32 %s66, 1
          %s167 = scalar_lea.sflag [#allocation3], %s166
          %s168 = sand.u32 %s66, 1
          %s169 = smul.addr %s168, 8
          %s170 = scalar_lea.vmem [#allocation2], %s169
          %171 = dma.done %s167, 128
        $region36: #{branch_1_fun.1} parent=31 // pred_fallthru
          _
      $region32: #{branch_1_fun.1} parent=5 // pred_fallthru
        _
    $region6: #{branch_1_fun.1} parent=1 // loop_footer
      %s14 = sadd.s32 1, %s10
    $region7: #{branch_1_fun.1} parent=1 // loop_footer_branch
      %9 = sbr.rel target = $region3
    $region8: #{branch_1_fun.1} parent=1 // loop_exit
      _
    %172 = vsyncpa [#allocation3], 1
    %s173 = scalar_lea.sflag [#allocation3], 1
    %174 = vsyncpa %s173, 1

</llo_original>
